<compile_context>
chip_gen: v6e
topology: v6e:2x2x1
jax: 0.10.0
libtpu: 0.0.40
codegen_flags: <defaults>
</compile_context>

<pallas_src>
import functools

import jax
import jax.numpy as jnp
from jax.experimental import pallas as pl
from jax.experimental.pallas import tpu as pltpu


def _attention_gate_kernel(g_ref, s_ref, halo_ref,
                           wg_ref, wsh_ref, b1_ref, wo_ref, bo_ref,
                           out_ref, *, tlg):
    g = g_ref[0]                                   # (tlg, Cg)   compute dtype
    x = s_ref[0]                                   # (tlg, 4Cs)  compute dtype

    # Per-tile halo rows (sequence ends are already zero rows -> conv zero padding).
    halo = halo_ref[...]                           # (1, 1, 2, 4Cs)
    prev_row = halo[0, 0, 0:1, :]                  # (1, 4Cs): last row of previous tile
    next_row = halo[0, 0, 1:2, :]                  # (1, 4Cs): first row of next tile

    # Rows shifted by +/-1 (XLU roll); tile-boundary rows patched from the halos.
    ridx = jax.lax.broadcasted_iota(jnp.int32, (tlg, 1), 0)
    x_dn = jnp.where(ridx == 0, prev_row,
                     pltpu.roll(x, shift=1 % tlg, axis=0))          # row l -> x[l-1]
    x_up = jnp.where(ridx == tlg - 1, next_row,
                     pltpu.roll(x, shift=(tlg - 1) % tlg, axis=0))   # row l -> x[l+1]

    # Fused pre-activation: ConvTranspose(g) + Conv3(s) (BN folded) + fused bias.
    pre = jnp.dot(g, wg_ref[...], preferred_element_type=jnp.float32)
    pre = pre + jnp.dot(x, wsh_ref[0], preferred_element_type=jnp.float32)
    pre = pre + jnp.dot(x_dn, wsh_ref[1], preferred_element_type=jnp.float32)
    pre = pre + jnp.dot(x_up, wsh_ref[2], preferred_element_type=jnp.float32)
    h = jnp.maximum(pre + b1_ref[...], 0.0)

    # 1x1 conv (block-diagonal in the packed layout) + sigmoid, then gate s.
    wo = wo_ref[...]
    logits = jnp.dot(h.astype(wo.dtype), wo, preferred_element_type=jnp.float32) + bo_ref[...]
    out_ref[0] = (jax.nn.sigmoid(logits) * x.astype(jnp.float32)).astype(out_ref.dtype)


def _pick_time_tile(lg, max_tile):
    """Largest sublane-aligned tile <= max_tile dividing lg, else the full axis."""
    if lg <= max_tile:
        return lg
    for t in range(max_tile - max_tile % 8, 7, -8):
        if lg % t == 0:
            return t
    return lg   # no 8-aligned divisor; fall back to one tile (full-dim block is always legal)


def attention_gate_pallas_channels_last(g_cl, s_cl, params, *,
                                        compute_dtype=jnp.bfloat16,
                                        max_time_tile=512):
    """g_cl: (B, Lg, Cg), s_cl: (B, Ls, Cs) with Ls == 4*Lg. Returns (B, Ls, Cs) f32."""
    B, Lg, Cg = g_cl.shape
    _, Ls, Cs = s_cl.shape
    assert Ls == 4 * Lg
    cs4 = 4 * Cs
    eps = 1e-5

    # ---- fold eval-mode BatchNorm into the preceding convs ------------------
    sg = params["bng_gamma"] / jnp.sqrt(params["bng_var"] + eps)
    wg_fold = params["wg_w"] * sg[None, :, None]                         # (Cg, Cs, 4)
    bg_fold = (params["wg_b"] - params["bng_mean"]) * sg + params["bng_beta"]
    ss = params["bns_gamma"] / jnp.sqrt(params["bns_var"] + eps)
    ws_fold = params["ws_w"] * ss[:, None, None]                         # (Cs, Cs, 3)
    bs_fold = (params["ws_b"] - params["bns_mean"]) * ss + params["bns_beta"]

    # ---- repack weights for the lane-dense (Lg, 4*Cs) layout ----------------
    # ConvTranspose1d(k=4, stride=4): packed col q*Cs+co of row l <-> (time 4l+q, chan co)
    wg_mat = jnp.transpose(wg_fold, (0, 2, 1)).reshape(Cg, cs4)          # (Cg, 4Cs)

    wk = jnp.transpose(ws_fold, (2, 1, 0))                               # (3, Cin, Cout)
    m_in = jnp.zeros((cs4, cs4), jnp.float32)       # in-row taps of the k=3 conv
    for p in range(4):                              # input slot within the 4-group
        for q in range(4):                          # output slot within the 4-group
            d = q - p
            if d == 0:
                blk = wk[1]
            elif d == 1:
                blk = wk[0]
            elif d == -1:
                blk = wk[2]
            else:
                continue
            m_in = m_in.at[p * Cs:(p + 1) * Cs, q * Cs:(q + 1) * Cs].set(blk)
    # taps that cross a 4-group boundary: prev row slot 3 -> slot 0, next row slot 0 -> slot 3.
    h_prev = jnp.zeros((cs4, cs4), jnp.float32).at[3 * Cs:, :Cs].set(wk[0])
    h_next = jnp.zeros((cs4, cs4), jnp.float32).at[:Cs, 3 * Cs:].set(wk[2])
    w_shift = jnp.stack([m_in, h_prev, h_next]).astype(compute_dtype)    # (3, 4Cs, 4Cs)
    wg_mat = wg_mat.astype(compute_dtype)

    bias1 = jnp.tile(bg_fold + bs_fold, 4).reshape(1, cs4).astype(jnp.float32)
    wo_blk = jnp.kron(jnp.eye(4, dtype=jnp.float32),
                      params["wo_w"][:, :, 0].T).astype(compute_dtype)   # (4Cs, 4Cs)
    bias_o = jnp.tile(params["wo_b"], 4).reshape(1, cs4).astype(jnp.float32)

    # ---- lane-dense packed activations (free row-major reshape) -------------
    g_pk = g_cl.astype(compute_dtype)                                    # (B, Lg, Cg)
    s_pk = s_cl.reshape(B, Lg, cs4).astype(compute_dtype)                # (B, Lg, 4Cs)

    # ---- time tiling + per-tile 1-row halos (zero rows encode conv padding) --
    tlg = _pick_time_tile(Lg, max_time_tile)
    nt = Lg // tlg
    zero = jnp.zeros((B, 1, cs4), compute_dtype)
    tile_last = s_pk[:, tlg - 1::tlg]                      # (B, nt, 4Cs)
    tile_first = s_pk[:, ::tlg]                            # (B, nt, 4Cs)
    s_tail = jnp.concatenate([zero, tile_last[:, :nt - 1]], axis=1)      # prev halo per tile
    s_head = jnp.concatenate([tile_first[:, 1:nt], zero], axis=1)        # next halo per tile
    halos = jnp.stack([s_tail, s_head], axis=2)            # (B, nt, 2, 4Cs)

    itemsize = jnp.dtype(compute_dtype).itemsize
    cost = pl.CostEstimate(
        flops=2 * B * Lg * cs4 * (Cg + 4 * cs4),
        transcendentals=B * Lg * cs4,
        bytes_accessed=(g_pk.size + s_pk.size + halos.size) * itemsize + B * Lg * cs4 * 4,
    )

    kernel = functools.partial(_attention_gate_kernel, tlg=tlg)
    out_pk = pl.pallas_call(
        kernel,
        out_shape=jax.ShapeDtypeStruct((B, Lg, cs4), jnp.float32),
        grid=(B, nt),
        in_specs=[
            pl.BlockSpec((1, tlg, Cg), lambda b, i: (b, i, 0)),
            pl.BlockSpec((1, tlg, cs4), lambda b, i: (b, i, 0)),
            pl.BlockSpec((1, 1, 2, cs4), lambda b, i: (b, i, 0, 0)),
            pl.BlockSpec((Cg, cs4), lambda b, i: (0, 0)),
            pl.BlockSpec((3, cs4, cs4), lambda b, i: (0, 0, 0)),
            pl.BlockSpec((1, cs4), lambda b, i: (0, 0)),
            pl.BlockSpec((cs4, cs4), lambda b, i: (0, 0)),
            pl.BlockSpec((1, cs4), lambda b, i: (0, 0)),
        ],
        out_specs=pl.BlockSpec((1, tlg, cs4), lambda b, i: (b, i, 0)),
        compiler_params=pltpu.CompilerParams(
            dimension_semantics=("parallel", "parallel")),
        cost_estimate=cost,
    )(g_pk, s_pk, halos, wg_mat, w_shift, bias1, wo_blk, bias_o)

    return out_pk.reshape(B, Ls, Cs)


def attention_gate_pallas(g_ncl, s_ncl, params, *, compute_dtype=jnp.bfloat16,
                          max_time_tile=512):
    """PyTorch-parity entry: g (B,Cg,Lg), s (B,Cs,Ls); returns (B, Ls, Cs).

    NOTE: the transposes below are full HBM passes done by XLA; production callers
    should feed channels-last activations to attention_gate_pallas_channels_last.
    """
    g_cl = jnp.transpose(g_ncl, (0, 2, 1))
    s_cl = jnp.transpose(s_ncl, (0, 2, 1))
    return attention_gate_pallas_channels_last(
        g_cl, s_cl, params, compute_dtype=compute_dtype, max_time_tile=max_time_tile)


def reference_forward(g_ncl, s_ncl, params):
    """Pure-JAX transcription of the PyTorch forward (eval-mode BN), NCL layout."""
    eps = 1e-5
    B, Cg, Lg = g_ncl.shape
    _, Cs, Ls = s_ncl.shape

    def bn(x, gamma, beta, mean, var):
        return ((x - mean[None, :, None]) / jnp.sqrt(var + eps)[None, :, None]
                * gamma[None, :, None] + beta[None, :, None])

    # ConvTranspose1d(k=4, stride=4): out[b, co, 4l+k] = sum_ci g[b, ci, l] * W[ci, co, k] + b
    t = jnp.einsum('bcl,cok->blko', g_ncl, params["wg_w"])
    wg = t.reshape(B, Ls, Cs).transpose(0, 2, 1) + params["wg_b"][None, :, None]
    wg = bn(wg, params["bng_gamma"], params["bng_beta"], params["bng_mean"], params["bng_var"])

    # Conv1d(k=3, pad=1)
    s_pad = jnp.pad(s_ncl, ((0, 0), (0, 0), (1, 1)))
    ws = sum(jnp.einsum('bcl,oc->bol', s_pad[:, :, k:k + Ls], params["ws_w"][:, :, k])
             for k in range(3)) + params["ws_b"][None, :, None]
    ws = bn(ws, params["bns_gamma"], params["bns_beta"], params["bns_mean"], params["bns_var"])

    h = jnp.maximum(wg + ws, 0.0)
    logits = jnp.einsum('bcl,oc->bol', h, params["wo_w"][:, :, 0]) + params["wo_b"][None, :, None]
    out = jax.nn.sigmoid(logits) * s_ncl
    return out.transpose(0, 2, 1)


if __name__ == "__main__":
    B, Cg, Cs, Lg = 2, 16, 8, 32
    Ls = 4 * Lg

    key = jax.random.PRNGKey(0)
    ks = jax.random.split(key, 16)
    sc = 0.1
    params = {
        "wg_w": sc * jax.random.normal(ks[0], (Cg, Cs, 4), jnp.float32),   # ConvT1d (in, out, k)
        "wg_b": sc * jax.random.normal(ks[1], (Cs,), jnp.float32),
        "bng_gamma": 1.0 + sc * jax.random.normal(ks[2], (Cs,), jnp.float32),
        "bng_beta": sc * jax.random.normal(ks[3], (Cs,), jnp.float32),
        "bng_mean": sc * jax.random.normal(ks[4], (Cs,), jnp.float32),
        "bng_var": 0.9 + 0.1 * jnp.abs(jax.random.normal(ks[5], (Cs,), jnp.float32)),
        "ws_w": sc * jax.random.normal(ks[6], (Cs, Cs, 3), jnp.float32),   # Conv1d (out, in, k)
        "ws_b": sc * jax.random.normal(ks[7], (Cs,), jnp.float32),
        "bns_gamma": 1.0 + sc * jax.random.normal(ks[8], (Cs,), jnp.float32),
        "bns_beta": sc * jax.random.normal(ks[9], (Cs,), jnp.float32),
        "bns_mean": sc * jax.random.normal(ks[10], (Cs,), jnp.float32),
        "bns_var": 0.9 + 0.1 * jnp.abs(jax.random.normal(ks[11], (Cs,), jnp.float32)),
        "wo_w": sc * jax.random.normal(ks[12], (Cs, Cs, 1), jnp.float32),  # 1x1 Conv1d
        "wo_b": sc * jax.random.normal(ks[13], (Cs,), jnp.float32),
    }

    g = jax.random.normal(ks[14], (B, Cg, Lg), jnp.float32)   # (N, C, L) like PyTorch
    s = jax.random.normal(ks[15], (B, Cs, Ls), jnp.float32)

    ref = jax.block_until_ready(reference_forward(g, s, params))

    # f32 matmuls, single time tile: tight numerical check.
    out_f32 = jax.block_until_ready(
        attention_gate_pallas(g, s, params, compute_dtype=jnp.float32))
    assert out_f32.shape == (B, Ls, Cs), out_f32.shape
    assert jnp.allclose(out_f32, ref, atol=2e-4, rtol=2e-4), \
        float(jnp.max(jnp.abs(out_f32 - ref)))

    # f32 matmuls, forced multi-tile grid (exercises the cross-tile halo path).
    out_tiled = jax.block_until_ready(
        attention_gate_pallas(g, s, params, compute_dtype=jnp.float32, max_time_tile=8))
    assert jnp.allclose(out_tiled, ref, atol=2e-4, rtol=2e-4), \
        float(jnp.max(jnp.abs(out_tiled - ref)))

    # bf16 matmul operands (f32 accumulation + f32 elementwise): performance config.
    out_bf16 = jax.block_until_ready(
        attention_gate_pallas(g, s, params, compute_dtype=jnp.bfloat16))
    assert jnp.allclose(out_bf16, ref, atol=3e-2, rtol=3e-2), \
        float(jnp.max(jnp.abs(out_bf16 - ref)))

    print("KERNEL_OK")
</pallas_src>

<mosaic_0001>
module attributes {stable_mosaic.version = 11 : i64} {
  func.func @_attention_gate_kernel(%arg0: i32, %arg1: i32, %arg2: memref<1x32x16xf32, #tpu.memory_space<vmem>>, %arg3: memref<1x32x32xf32, #tpu.memory_space<vmem>>, %arg4: memref<1x1x2x32xf32, #tpu.memory_space<vmem>>, %arg5: memref<16x32xf32, #tpu.memory_space<vmem>>, %arg6: memref<3x32x32xf32, #tpu.memory_space<vmem>>, %arg7: memref<1x32xf32, #tpu.memory_space<vmem>>, %arg8: memref<32x32xf32, #tpu.memory_space<vmem>>, %arg9: memref<1x32xf32, #tpu.memory_space<vmem>>, %arg10: memref<1x32x32xf32, #tpu.memory_space<vmem>>) attributes {dimension_semantics = [#tpu.dimension_semantics<parallel>, #tpu.dimension_semantics<parallel>], iteration_bounds = array<i64: 2, 1>, scalar_prefetch = 0 : i64, scratch_operands = 0 : i64, tpu.core_type = #tpu.core_type<tc>, window_params = [{transform_indices = @transform_0, window_bounds = array<i64: 1, 32, 16>}, {transform_indices = @transform_1, window_bounds = array<i64: 1, 32, 32>}, {transform_indices = @transform_2, window_bounds = array<i64: 1, 1, 2, 32>}, {pipeline_mode = #tpu.pipeline_mode<synchronous>, transform_indices = @transform_3, window_bounds = array<i64: 16, 32>}, {pipeline_mode = #tpu.pipeline_mode<synchronous>, transform_indices = @transform_4, window_bounds = array<i64: 3, 32, 32>}, {pipeline_mode = #tpu.pipeline_mode<synchronous>, transform_indices = @transform_5, window_bounds = array<i64: 1, 32>}, {pipeline_mode = #tpu.pipeline_mode<synchronous>, transform_indices = @transform_6, window_bounds = array<i64: 32, 32>}, {pipeline_mode = #tpu.pipeline_mode<synchronous>, transform_indices = @transform_7, window_bounds = array<i64: 1, 32>}, {transform_indices = @transform_8, window_bounds = array<i64: 1, 32, 32>}]} {
    %c0 = arith.constant 0 : index
    %c0_0 = arith.constant 0 : index
    %c0_1 = arith.constant 0 : index
    %0 = vector.load %arg2[%c0, %c0_0, %c0_1] : memref<1x32x16xf32, #tpu.memory_space<vmem>>, vector<1x32x16xf32>
    %1 = vector.shape_cast %0 : vector<1x32x16xf32> to vector<32x16xf32>
    %c0_2 = arith.constant 0 : index
    %c0_3 = arith.constant 0 : index
    %c0_4 = arith.constant 0 : index
    %2 = vector.load %arg3[%c0_2, %c0_3, %c0_4] : memref<1x32x32xf32, #tpu.memory_space<vmem>>, vector<1x32x32xf32>
    %3 = vector.shape_cast %2 : vector<1x32x32xf32> to vector<32x32xf32>
    %c0_5 = arith.constant 0 : index
    %c0_6 = arith.constant 0 : index
    %c0_7 = arith.constant 0 : index
    %c0_8 = arith.constant 0 : index
    %4 = vector.load %arg4[%c0_5, %c0_6, %c0_7, %c0_8] : memref<1x1x2x32xf32, #tpu.memory_space<vmem>>, vector<1x1x2x32xf32>
    %5 = vector.extract_strided_slice %4 {offsets = [0, 0, 0, 0], sizes = [1, 1, 1, 32], strides = [1, 1, 1, 1]} : vector<1x1x2x32xf32> to vector<1x1x1x32xf32>
    %6 = vector.shape_cast %5 : vector<1x1x1x32xf32> to vector<1x32xf32>
    %7 = vector.extract_strided_slice %4 {offsets = [0, 0, 1, 0], sizes = [1, 1, 1, 32], strides = [1, 1, 1, 1]} : vector<1x1x2x32xf32> to vector<1x1x1x32xf32>
    %8 = vector.shape_cast %7 : vector<1x1x1x32xf32> to vector<1x32xf32>
    %9 = tpu.iota {dimensions = array<i32: 0>} : vector<32x1xi32>
    %c0_i32 = arith.constant 0 : i32
    %10 = vector.broadcast %c0_i32 : i32 to vector<32x1xi32>
    %11 = arith.cmpi eq, %9, %10 : vector<32x1xi32>
    %c1_i32 = arith.constant 1 : i32
    %12 = tpu.dynamic_rotate %3 by %c1_i32 dim 0 : vector<32x32xf32>, i32 -> vector<32x32xf32>
    %13 = vector.shape_cast %11 : vector<32x1xi1> to vector<32x1xi1>
    %14 = vector.broadcast %13 : vector<32x1xi1> to vector<32x32xi1>
    %15 = vector.shape_cast %6 : vector<1x32xf32> to vector<1x32xf32>
    %16 = vector.broadcast %15 : vector<1x32xf32> to vector<32x32xf32>
    %17 = arith.select %14, %16, %12 : vector<32x32xi1>, vector<32x32xf32>
    %c31_i32 = arith.constant 31 : i32
    %18 = vector.broadcast %c31_i32 : i32 to vector<32x1xi32>
    %19 = arith.cmpi eq, %9, %18 : vector<32x1xi32>
    %c31_i32_9 = arith.constant 31 : i32
    %20 = tpu.dynamic_rotate %3 by %c31_i32_9 dim 0 : vector<32x32xf32>, i32 -> vector<32x32xf32>
    %21 = vector.shape_cast %19 : vector<32x1xi1> to vector<32x1xi1>
    %22 = vector.broadcast %21 : vector<32x1xi1> to vector<32x32xi1>
    %23 = vector.shape_cast %8 : vector<1x32xf32> to vector<1x32xf32>
    %24 = vector.broadcast %23 : vector<1x32xf32> to vector<32x32xf32>
    %25 = arith.select %22, %24, %20 : vector<32x32xi1>, vector<32x32xf32>
    %c0_10 = arith.constant 0 : index
    %c0_11 = arith.constant 0 : index
    %26 = vector.load %arg5[%c0_10, %c0_11] : memref<16x32xf32, #tpu.memory_space<vmem>>, vector<16x32xf32>
    %cst = arith.constant dense<0.000000e+00> : vector<32x32xf32>
    %27 = tpu.matmul %1, %26, %cst {dimension_numbers = #tpu.dot_dimension_numbers<[1], [0], [0], [1], [0, 0, 1, 1], [], []>} : vector<32x16xf32>, vector<16x32xf32>, vector<32x32xf32> -> vector<32x32xf32>
    %c0_12 = arith.constant 0 : index
    %c0_13 = arith.constant 0 : index
    %c0_14 = arith.constant 0 : index
    %28 = vector.load %arg6[%c0_12, %c0_13, %c0_14] : memref<3x32x32xf32, #tpu.memory_space<vmem>>, vector<1x32x32xf32>
    %29 = vector.shape_cast %28 : vector<1x32x32xf32> to vector<32x32xf32>
    %cst_15 = arith.constant dense<0.000000e+00> : vector<32x32xf32>
    %30 = tpu.matmul %3, %29, %cst_15 {dimension_numbers = #tpu.dot_dimension_numbers<[1], [0], [0], [1], [0, 0, 1, 1], [], []>} : vector<32x32xf32>, vector<32x32xf32>, vector<32x32xf32> -> vector<32x32xf32>
    %31 = arith.addf %27, %30 : vector<32x32xf32>
    %c1 = arith.constant 1 : index
    %c0_16 = arith.constant 0 : index
    %c0_17 = arith.constant 0 : index
    %32 = vector.load %arg6[%c1, %c0_16, %c0_17] : memref<3x32x32xf32, #tpu.memory_space<vmem>>, vector<1x32x32xf32>
    %33 = vector.shape_cast %32 : vector<1x32x32xf32> to vector<32x32xf32>
    %cst_18 = arith.constant dense<0.000000e+00> : vector<32x32xf32>
    %34 = tpu.matmul %17, %33, %cst_18 {dimension_numbers = #tpu.dot_dimension_numbers<[1], [0], [0], [1], [0, 0, 1, 1], [], []>} : vector<32x32xf32>, vector<32x32xf32>, vector<32x32xf32> -> vector<32x32xf32>
    %35 = arith.addf %31, %34 : vector<32x32xf32>
    %c2 = arith.constant 2 : index
    %c0_19 = arith.constant 0 : index
    %c0_20 = arith.constant 0 : index
    %36 = vector.load %arg6[%c2, %c0_19, %c0_20] : memref<3x32x32xf32, #tpu.memory_space<vmem>>, vector<1x32x32xf32>
    %37 = vector.shape_cast %36 : vector<1x32x32xf32> to vector<32x32xf32>
    %cst_21 = arith.constant dense<0.000000e+00> : vector<32x32xf32>
    %38 = tpu.matmul %25, %37, %cst_21 {dimension_numbers = #tpu.dot_dimension_numbers<[1], [0], [0], [1], [0, 0, 1, 1], [], []>} : vector<32x32xf32>, vector<32x32xf32>, vector<32x32xf32> -> vector<32x32xf32>
    %39 = arith.addf %35, %38 : vector<32x32xf32>
    %c0_22 = arith.constant 0 : index
    %c0_23 = arith.constant 0 : index
    %40 = vector.load %arg7[%c0_22, %c0_23] : memref<1x32xf32, #tpu.memory_space<vmem>>, vector<1x32xf32>
    %41 = vector.broadcast %40 : vector<1x32xf32> to vector<32x32xf32>
    %42 = arith.addf %39, %41 : vector<32x32xf32>
    %cst_24 = arith.constant 0.000000e+00 : f32
    %43 = vector.broadcast %cst_24 : f32 to vector<32x32xf32>
    %44 = arith.maximumf %42, %43 : vector<32x32xf32>
    %c0_25 = arith.constant 0 : index
    %c0_26 = arith.constant 0 : index
    %45 = vector.load %arg8[%c0_25, %c0_26] : memref<32x32xf32, #tpu.memory_space<vmem>>, vector<32x32xf32>
    %cst_27 = arith.constant dense<0.000000e+00> : vector<32x32xf32>
    %46 = tpu.matmul %44, %45, %cst_27 {dimension_numbers = #tpu.dot_dimension_numbers<[1], [0], [0], [1], [0, 0, 1, 1], [], []>} : vector<32x32xf32>, vector<32x32xf32>, vector<32x32xf32> -> vector<32x32xf32>
    %c0_28 = arith.constant 0 : index
    %c0_29 = arith.constant 0 : index
    %47 = vector.load %arg9[%c0_28, %c0_29] : memref<1x32xf32, #tpu.memory_space<vmem>>, vector<1x32xf32>
    %48 = vector.broadcast %47 : vector<1x32xf32> to vector<32x32xf32>
    %49 = arith.addf %46, %48 : vector<32x32xf32>
    %50 = arith.negf %49 : vector<32x32xf32>
    %51 = math.exp %50 : vector<32x32xf32>
    %cst_30 = arith.constant 1.000000e+00 : f32
    %52 = vector.broadcast %cst_30 : f32 to vector<32x32xf32>
    %53 = arith.addf %52, %51 : vector<32x32xf32>
    %54 = arith.divf %52, %53 : vector<32x32xf32>
    %55 = arith.mulf %54, %3 : vector<32x32xf32>
    %c0_31 = arith.constant 0 : index
    %c0_32 = arith.constant 0 : index
    %c0_33 = arith.constant 0 : index
    %56 = vector.load %arg10[%c0_31, %c0_32, %c0_33] : memref<1x32x32xf32, #tpu.memory_space<vmem>>, vector<1x32x32xf32>
    %57 = vector.shape_cast %56 : vector<1x32x32xf32> to vector<32x32xf32>
    %58 = vector.shape_cast %55 : vector<32x32xf32> to vector<1x32x32xf32>
    tpu.vector_store %arg10[%c0_31, %c0_32, %c0_33], %58 {strides = array<i32>} : memref<1x32x32xf32, #tpu.memory_space<vmem>>, vector<1x32x32xf32>,
    return
  }
  func.func @transform_0(%arg0: i32, %arg1: i32) -> (i32, i32, i32) {
    %c0_i32 = arith.constant 0 : i32
    %c0_i32_0 = arith.constant 0 : i32
    return %arg0, %arg1, %c0_i32 : i32, i32, i32
  }
  func.func @transform_1(%arg0: i32, %arg1: i32) -> (i32, i32, i32) {
    %c0_i32 = arith.constant 0 : i32
    %c0_i32_0 = arith.constant 0 : i32
    return %arg0, %arg1, %c0_i32 : i32, i32, i32
  }
  func.func @transform_2(%arg0: i32, %arg1: i32) -> (i32, i32, i32, i32) {
    %c0_i32 = arith.constant 0 : i32
    %c0_i32_0 = arith.constant 0 : i32
    %c0_i32_1 = arith.constant 0 : i32
    return %arg0, %arg1, %c0_i32, %c0_i32_0 : i32, i32, i32, i32
  }
  func.func @transform_3(%arg0: i32, %arg1: i32) -> (i32, i32) {
    %c0_i32 = arith.constant 0 : i32
    %c0_i32_0 = arith.constant 0 : i32
    %c0_i32_1 = arith.constant 0 : i32
    return %c0_i32, %c0_i32_0 : i32, i32
  }
  func.func @transform_4(%arg0: i32, %arg1: i32) -> (i32, i32, i32) {
    %c0_i32 = arith.constant 0 : i32
    %c0_i32_0 = arith.constant 0 : i32
    %c0_i32_1 = arith.constant 0 : i32
    %c0_i32_2 = arith.constant 0 : i32
    return %c0_i32, %c0_i32_0, %c0_i32_1 : i32, i32, i32
  }
  func.func @transform_5(%arg0: i32, %arg1: i32) -> (i32, i32) {
    %c0_i32 = arith.constant 0 : i32
    %c0_i32_0 = arith.constant 0 : i32
    %c0_i32_1 = arith.constant 0 : i32
    return %c0_i32, %c0_i32_0 : i32, i32
  }
  func.func @transform_6(%arg0: i32, %arg1: i32) -> (i32, i32) {
    %c0_i32 = arith.constant 0 : i32
    %c0_i32_0 = arith.constant 0 : i32
    %c0_i32_1 = arith.constant 0 : i32
    return %c0_i32, %c0_i32_0 : i32, i32
  }
  func.func @transform_7(%arg0: i32, %arg1: i32) -> (i32, i32) {
    %c0_i32 = arith.constant 0 : i32
    %c0_i32_0 = arith.constant 0 : i32
    %c0_i32_1 = arith.constant 0 : i32
    return %c0_i32, %c0_i32_0 : i32, i32
  }
  func.func @transform_8(%arg0: i32, %arg1: i32) -> (i32, i32, i32) {
    %c0_i32 = arith.constant 0 : i32
    %c0_i32_0 = arith.constant 0 : i32
    return %arg0, %arg1, %c0_i32 : i32, i32, i32
  }
}

</mosaic_0001>

<llo_original>
// kernel: tpu_custom_call.1
$region0: #{tpu_custom_call.1}
  #allocation0 [shape = 'u32[]', space=smem, size = 0x4, offset = 0x4, fixed_abs, tag = 'smem constant byte address 0x4 - core index']
  #allocation1 [shape = 'u32[144,128]{1,0:T(1,128)}', space=vmem, size = 0x12000, scoped, tag = 'internal scratch']
  %s0 = inlined_call_operand.vmem [shape: f32[2,32,16], index: 0, kind: input, shape index: {}]
  %s1 = inlined_call_operand.hbm [shape: f32[2,32,32], index: 1, kind: input, shape index: {}]
  %s2 = inlined_call_operand.vmem [shape: f32[2,1,2,32], index: 2, kind: input, shape index: {}]
  %s3 = inlined_call_operand.hbm [shape: f32[16,32], index: 3, kind: input, shape index: {}]
  %s4 = inlined_call_operand.vmem [shape: f32[3,32,32], index: 4, kind: input, shape index: {}]
  %s5 = inlined_call_operand.vmem [shape: f32[1,32], index: 5, kind: input, shape index: {}]
  %s6 = inlined_call_operand.hbm [shape: f32[32,32], index: 6, kind: input, shape index: {}]
  %s7 = inlined_call_operand.vmem [shape: f32[1,32], index: 7, kind: input, shape index: {}]
  %s8 = inlined_call_operand.hbm [shape: f32[2,32,32], index: 8, kind: output, shape index: {}]
  %s9 = sld [smem:[#allocation0]]
  $region77: #{tpu_custom_call.1} parent=0
    _
  %s11 = ssub.s32 1, %s9
  %s12 = scalar_select 0, %s11, %s9
  $region1: #{tpu_custom_call.1} parent=0
    #allocation2 [shape = 'u8[32768]{0}', space=vmem, size = 0x8000, scoped, tag = 'input window, operand 1']
    #allocation3 [shape = 's32[2]{0}', space=sflag, size = 0x8, scoped, tag = 'scoped memory for tpu_custom_call.1']
    #allocation4 [shape = 's32[2]{0}', space=sflag, size = 0x8, scoped, tag = 'scoped memory for tpu_custom_call.1']
    #allocation5 [shape = 'u8[8192]{0}', space=vmem, size = 0x2000, scoped, tag = 'input window, operand 3, single buffered']
    #allocation6 [shape = 's32[1]{0}', space=sflag, size = 0x4, scoped, tag = 'scoped memory for tpu_custom_call.1']
    #allocation7 [shape = 'u8[16384]{0}', space=vmem, size = 0x4000, scoped, tag = 'input window, operand 6, single buffered']
    #allocation8 [shape = 'u8[32768]{0}', space=vmem, size = 0x8000, scoped, tag = 'output window, operand 0']
    %13 = vsyncpa [#allocation3], 0
    %s14 = scalar_lea.sflag [#allocation3], 1
    %15 = vsyncpa %s14, 0
    %16 = vsyncpa [#allocation6], 0
    %17 = vsyncpa [#allocation4], 0
    %s18 = scalar_lea.sflag [#allocation4], 1
    %19 = vsyncpa %s18, 0
    loop: start=0, step=1, limit=4
    $region2: #{tpu_custom_call.1} parent=1 // loop_pre_header
      _
    $region3: #{tpu_custom_call.1} parent=1 // loop_header
      %s21 = sphi 0, %s25
      %p22 = scmp.ge.s32.totalorder %s21, 4
      %s28 = sphi 0, %s40
      %s29 = sphi 0, %s36
      %s30 = sphi 0, %s28
      %s31 = sphi 0, %s29
      %s32 = sphi 0, %s30
      %s33 = sphi 0, %s31
      %s45 = sphi 0, %s47
      %s48 = sphi 0, %s45
      %s49 = sphi 0, %s48
      %s65 = sphi 0, %s49
      %s73 = sphi 0, %s75
      %s76 = sphi 0, %s73
      %s77 = sphi 0, %s76
      %s93 = sphi 0, %s77
      %s101 = sphi 0, %s103
      %s104 = sphi 0, %s101
      %s105 = sphi 0, %s104
      %s121 = sphi 0, %s105
      %s125 = sphi 0, %s125
      %s127 = sphi 0, %s125
      %s128 = sphi 0, %s127
      %s142 = sphi 0, %s128
      %s146 = sphi 0, %s146
      %s148 = sphi 0, %s146
      %s149 = sphi 0, %s148
      %s163 = sphi 0, %s149
      %s167 = sphi 0, %s167
      %s169 = sphi 0, %s167
      %s170 = sphi 0, %s169
      %s184 = sphi 0, %s170
      %s188 = sphi 0, %s188
      %s190 = sphi 0, %s188
      %s191 = sphi 0, %s190
      %s205 = sphi 0, %s191
      %s209 = sphi 0, %s209
      %s211 = sphi 0, %s209
      %s212 = sphi 0, %s211
      %s226 = sphi 0, %s212
      %s234 = sphi 0, %s236
      %s237 = sphi 0, %s234
      %s238 = sphi 0, %s237
      %s254 = sphi 0, %s238
    $region4: #{tpu_custom_call.1} parent=1 // loop_header_branch
      %24 = sbr.rel (%p22) target = $region8
    $region5: #{tpu_custom_call.1} parent=1 // loop_body
      %s26 = ssub.s32 %s21, 1
      %s27 = ssub.s32 %s21, 2
      %s34 = sadd.s32 1, %s29
      %p35 = scmp.ge.s32.totalorder %s34, 1
      %s36 = scalar_select %p35, 0, %s34
      %s37 = sadd.s32 1, %s28
      %s38 = scalar_select %p35, %s37, %s28
      %p39 = scmp.ge.s32.totalorder %s38, 2
      %s40 = scalar_select %p39, 0, %s38
      %s41 = ssub.s32 %s28, %s40
      %s42 = ssub.s32 %s29, %s36
      %s43 = sor.u32 %s41, %s42
      %p44 = scmp.eq.s32.totalorder %s43, 0
      %s46 = sadd.s32 %s45, 1
      %s47 = scalar_select %p44, %s45, %s46
      %p50 = pneg %p44
      %p51 = scmp.eq.s32.totalorder %s21, 1
      %p52 = por %p50, %p51
      %p53 = scmp.ne.s32.totalorder %s45, %s48
      %p54 = scmp.eq.s32.totalorder %s21, 0
      %p55 = por %p53, %p54
      %p56 = scmp.ne.s32.totalorder %s45, %s48
      %p57 = scmp.eq.s32.totalorder %s26, 1
      %p58 = por %p56, %p57
      %p59 = scmp.ne.s32.totalorder %s48, %s49
      %p60 = scmp.eq.s32.totalorder %s26, 0
      %p61 = por %p59, %p60
      %p62 = scmp.ne.s32.totalorder %s48, %s49
      %p63 = scmp.eq.s32.totalorder %s27, 1
      %p64 = por %p62, %p63
      %p66 = scmp.ne.s32.totalorder %s49, %s65
      %p67 = scmp.eq.s32.totalorder %s27, 0
      %p68 = por %p66, %p67
      %s69 = ssub.s32 %s28, %s40
      %s70 = ssub.s32 %s29, %s36
      %s71 = sor.u32 %s69, %s70
      %p72 = scmp.eq.s32.totalorder %s71, 0
      %s74 = sadd.s32 %s73, 1
      %s75 = scalar_select %p72, %s73, %s74
      %p78 = pneg %p72
      %p79 = scmp.eq.s32.totalorder %s21, 1
      %p80 = por %p78, %p79
      %p81 = scmp.ne.s32.totalorder %s73, %s76
      %p82 = scmp.eq.s32.totalorder %s21, 0
      %p83 = por %p81, %p82
      %p84 = scmp.ne.s32.totalorder %s73, %s76
      %p85 = scmp.eq.s32.totalorder %s26, 1
      %p86 = por %p84, %p85
      %p87 = scmp.ne.s32.totalorder %s76, %s77
      %p88 = scmp.eq.s32.totalorder %s26, 0
      %p89 = por %p87, %p88
      %p90 = scmp.ne.s32.totalorder %s76, %s77
      %p91 = scmp.eq.s32.totalorder %s27, 1
      %p92 = por %p90, %p91
      %p94 = scmp.ne.s32.totalorder %s77, %s93
      %p95 = scmp.eq.s32.totalorder %s27, 0
      %p96 = por %p94, %p95
      %s97 = ssub.s32 %s28, %s40
      %s98 = ssub.s32 %s29, %s36
      %s99 = sor.u32 %s97, %s98
      %p100 = scmp.eq.s32.totalorder %s99, 0
      %s102 = sadd.s32 %s101, 1
      %s103 = scalar_select %p100, %s101, %s102
      %p106 = pneg %p100
      %p107 = scmp.eq.s32.totalorder %s21, 1
      %p108 = por %p106, %p107
      %p109 = scmp.ne.s32.totalorder %s101, %s104
      %p110 = scmp.eq.s32.totalorder %s21, 0
      %p111 = por %p109, %p110
      %p112 = scmp.ne.s32.totalorder %s101, %s104
      %p113 = scmp.eq.s32.totalorder %s26, 1
      %p114 = por %p112, %p113
      %p115 = scmp.ne.s32.totalorder %s104, %s105
      %p116 = scmp.eq.s32.totalorder %s26, 0
      %p117 = por %p115, %p116
      %p118 = scmp.ne.s32.totalorder %s104, %s105
      %p119 = scmp.eq.s32.totalorder %s27, 1
      %p120 = por %p118, %p119
      %p122 = scmp.ne.s32.totalorder %s105, %s121
      %p123 = scmp.eq.s32.totalorder %s27, 0
      %p124 = por %p122, %p123
      %s126 = sadd.s32 %s125, 1
      %p129 = scmp.eq.s32.totalorder %s21, 1
      %p130 = scmp.ne.s32.totalorder %s125, %s127
      %p131 = scmp.eq.s32.totalorder %s21, 0
      %p132 = por %p130, %p131
      %p133 = scmp.ne.s32.totalorder %s125, %s127
      %p134 = scmp.eq.s32.totalorder %s26, 1
      %p135 = por %p133, %p134
      %p136 = scmp.ne.s32.totalorder %s127, %s128
      %p137 = scmp.eq.s32.totalorder %s26, 0
      %p138 = por %p136, %p137
      %p139 = scmp.ne.s32.totalorder %s127, %s128
      %p140 = scmp.eq.s32.totalorder %s27, 1
      %p141 = por %p139, %p140
      %p143 = scmp.ne.s32.totalorder %s128, %s142
      %p144 = scmp.eq.s32.totalorder %s27, 0
      %p145 = por %p143, %p144
      %s147 = sadd.s32 %s146, 1
      %p150 = scmp.eq.s32.totalorder %s21, 1
      %p151 = scmp.ne.s32.totalorder %s146, %s148
      %p152 = scmp.eq.s32.totalorder %s21, 0
      %p153 = por %p151, %p152
      %p154 = scmp.ne.s32.totalorder %s146, %s148
      %p155 = scmp.eq.s32.totalorder %s26, 1
      %p156 = por %p154, %p155
      %p157 = scmp.ne.s32.totalorder %s148, %s149
      %p158 = scmp.eq.s32.totalorder %s26, 0
      %p159 = por %p157, %p158
      %p160 = scmp.ne.s32.totalorder %s148, %s149
      %p161 = scmp.eq.s32.totalorder %s27, 1
      %p162 = por %p160, %p161
      %p164 = scmp.ne.s32.totalorder %s149, %s163
      %p165 = scmp.eq.s32.totalorder %s27, 0
      %p166 = por %p164, %p165
      %s168 = sadd.s32 %s167, 1
      %p171 = scmp.eq.s32.totalorder %s21, 1
      %p172 = scmp.ne.s32.totalorder %s167, %s169
      %p173 = scmp.eq.s32.totalorder %s21, 0
      %p174 = por %p172, %p173
      %p175 = scmp.ne.s32.totalorder %s167, %s169
      %p176 = scmp.eq.s32.totalorder %s26, 1
      %p177 = por %p175, %p176
      %p178 = scmp.ne.s32.totalorder %s169, %s170
      %p179 = scmp.eq.s32.totalorder %s26, 0
      %p180 = por %p178, %p179
      %p181 = scmp.ne.s32.totalorder %s169, %s170
      %p182 = scmp.eq.s32.totalorder %s27, 1
      %p183 = por %p181, %p182
      %p185 = scmp.ne.s32.totalorder %s170, %s184
      %p186 = scmp.eq.s32.totalorder %s27, 0
      %p187 = por %p185, %p186
      %s189 = sadd.s32 %s188, 1
      %p192 = scmp.eq.s32.totalorder %s21, 1
      %p193 = scmp.ne.s32.totalorder %s188, %s190
      %p194 = scmp.eq.s32.totalorder %s21, 0
      %p195 = por %p193, %p194
      %p196 = scmp.ne.s32.totalorder %s188, %s190
      %p197 = scmp.eq.s32.totalorder %s26, 1
      %p198 = por %p196, %p197
      %p199 = scmp.ne.s32.totalorder %s190, %s191
      %p200 = scmp.eq.s32.totalorder %s26, 0
      %p201 = por %p199, %p200
      %p202 = scmp.ne.s32.totalorder %s190, %s191
      %p203 = scmp.eq.s32.totalorder %s27, 1
      %p204 = por %p202, %p203
      %p206 = scmp.ne.s32.totalorder %s191, %s205
      %p207 = scmp.eq.s32.totalorder %s27, 0
      %p208 = por %p206, %p207
      %s210 = sadd.s32 %s209, 1
      %p213 = scmp.eq.s32.totalorder %s21, 1
      %p214 = scmp.ne.s32.totalorder %s209, %s211
      %p215 = scmp.eq.s32.totalorder %s21, 0
      %p216 = por %p214, %p215
      %p217 = scmp.ne.s32.totalorder %s209, %s211
      %p218 = scmp.eq.s32.totalorder %s26, 1
      %p219 = por %p217, %p218
      %p220 = scmp.ne.s32.totalorder %s211, %s212
      %p221 = scmp.eq.s32.totalorder %s26, 0
      %p222 = por %p220, %p221
      %p223 = scmp.ne.s32.totalorder %s211, %s212
      %p224 = scmp.eq.s32.totalorder %s27, 1
      %p225 = por %p223, %p224
      %p227 = scmp.ne.s32.totalorder %s212, %s226
      %p228 = scmp.eq.s32.totalorder %s27, 0
      %p229 = por %p227, %p228
      %s230 = ssub.s32 %s28, %s40
      %s231 = ssub.s32 %s29, %s36
      %s232 = sor.u32 %s230, %s231
      %p233 = scmp.eq.s32.totalorder %s232, 0
      %s235 = sadd.s32 %s234, 1
      %s236 = scalar_select %p233, %s234, %s235
      %p239 = pneg %p233
      %p240 = scmp.eq.s32.totalorder %s21, 1
      %p241 = por %p239, %p240
      %p242 = scmp.ne.s32.totalorder %s234, %s237
      %p243 = scmp.eq.s32.totalorder %s21, 0
      %p244 = por %p242, %p243
      %p245 = scmp.ne.s32.totalorder %s234, %s237
      %p246 = scmp.eq.s32.totalorder %s26, 1
      %p247 = por %p245, %p246
      %p248 = scmp.ne.s32.totalorder %s237, %s238
      %p249 = scmp.eq.s32.totalorder %s26, 0
      %p250 = por %p248, %p249
      %p251 = scmp.ne.s32.totalorder %s237, %s238
      %p252 = scmp.eq.s32.totalorder %s27, 1
      %p253 = por %p251, %p252
      %p255 = scmp.ne.s32.totalorder %s238, %s254
      %p256 = scmp.eq.s32.totalorder %s27, 0
      %p257 = por %p255, %p256
      %p258 = scmp.le.s32.totalorder 1, %s21
      %p259 = scmp.lt.s32.totalorder %s21, 3
      %p260 = pnand %p258, %p259
      %p261 = pneg %p260
      // Predicated region
      $region9: #{tpu_custom_call.1} parent=5 // pred_check
        _
      $region10: #{tpu_custom_call.1} parent=5 // pred_check_branch
        %263 = sbr.rel (%p260) target = $region12
      $region11: #{tpu_custom_call.1} parent=5 // pred_region
        %s264 = ssub.s32 %s21, 1
        // Predicated region
        $region13: #{tpu_custom_call.1} parent=11 // pred_check
          %p265 = pneg %p138
        $region14: #{tpu_custom_call.1} parent=11 // pred_check_branch
          %267 = sbr.rel (%p265) target = $region16
        $region15: #{tpu_custom_call.1} parent=11 // pred_region
          %s269 = ssub.s32 256, 256
          %270 = vsyncadd [#allocation6], %s269
          %s271 = sshll.u32 [#allocation5], 4
          %s272 = int_to_ptr.vmem [resolvable:$true] %s271
          %277 = dma.hbm_to_vmem [thread:$0]  %s3, 256, %s272, [#allocation6], 128, 128, 8
        $region16: #{tpu_custom_call.1} parent=11 // pred_fallthru
          _
        // Predicated region
        $region17: #{tpu_custom_call.1} parent=11 // pred_check
          %p278 = pneg %p159
        $region18: #{tpu_custom_call.1} parent=11 // pred_check_branch
          %280 = sbr.rel (%p278) target = $region20
        $region19: #{tpu_custom_call.1} parent=11 // pred_region
          _
        $region20: #{tpu_custom_call.1} parent=11 // pred_fallthru
          _
        // Predicated region
        $region21: #{tpu_custom_call.1} parent=11 // pred_check
          %p281 = pneg %p180
        $region22: #{tpu_custom_call.1} parent=11 // pred_check_branch
          %283 = sbr.rel (%p281) target = $region24
        $region23: #{tpu_custom_call.1} parent=11 // pred_region
          _
        $region24: #{tpu_custom_call.1} parent=11 // pred_fallthru
          _
        // Predicated region
        $region25: #{tpu_custom_call.1} parent=11 // pred_check
          %p284 = pneg %p201
        $region26: #{tpu_custom_call.1} parent=11 // pred_check_branch
          %286 = sbr.rel (%p284) target = $region28
        $region27: #{tpu_custom_call.1} parent=11 // pred_region
          %s288 = ssub.s32 512, 512
          %289 = vsyncadd [#allocation6], %s288
          %s290 = sshll.u32 [#allocation7], 4
          %s291 = int_to_ptr.vmem [resolvable:$true] %s290
          %296 = dma.hbm_to_vmem [thread:$0]  %s6, 512, %s291, [#allocation6], 128, 128, 8
        $region28: #{tpu_custom_call.1} parent=11 // pred_fallthru
          _
        // Predicated region
        $region29: #{tpu_custom_call.1} parent=11 // pred_check
          %p297 = pneg %p222
        $region30: #{tpu_custom_call.1} parent=11 // pred_check_branch
          %299 = sbr.rel (%p297) target = $region32
        $region31: #{tpu_custom_call.1} parent=11 // pred_region
          _
        $region32: #{tpu_custom_call.1} parent=11 // pred_fallthru
          _
      $region12: #{tpu_custom_call.1} parent=5 // pred_fallthru
        _
      %p300 = scmp.lt.s32.totalorder %s21, 2
      // Predicated region
      $region33: #{tpu_custom_call.1} parent=5 // pred_check
        %p301 = pneg %p300
      $region34: #{tpu_custom_call.1} parent=5 // pred_check_branch
        %303 = sbr.rel (%p301) target = $region36
      $region35: #{tpu_custom_call.1} parent=5 // pred_region
        // Predicated region
        $region37: #{tpu_custom_call.1} parent=35 // pred_check
          %p304 = pneg %p55
        $region38: #{tpu_custom_call.1} parent=35 // pred_check_branch
          %306 = sbr.rel (%p304) target = $region40
        $region39: #{tpu_custom_call.1} parent=35 // pred_region
          %s307 = smul.u32 4, %s29
          %p308 = scmp.lt.s32.totalorder %s28, 1
          %s309 = scalar_select %p308, %s28, 1
          %p310 = scmp.lt.s32.totalorder %s307, 3
          %s311 = scalar_select %p310, %s307, 3
          %s312 = smul.addr %s309, 4
          %s313 = sadd.s32 %s311, %s312
          %s314 = smul.addr %s313, 8
          %s315 = scalar_lea.vmem %s0, %s314
          %s316 = smul.u32 4, %s29
        $region40: #{tpu_custom_call.1} parent=35 // pred_fallthru
          _
        // Predicated region
        $region41: #{tpu_custom_call.1} parent=35 // pred_check
          %p317 = pneg %p83
        $region42: #{tpu_custom_call.1} parent=35 // pred_check_branch
          %319 = sbr.rel (%p317) target = $region44
        $region43: #{tpu_custom_call.1} parent=35 // pred_region
          %s320 = sand.u32 %s73, 1
          %s321 = scalar_lea.sflag [#allocation3], %s320
          %s322 = sand.u32 %s73, 1
          %s323 = smul.addr %s322, 32
          %s324 = scalar_lea.vmem [#allocation2], %s323
          %s325 = smul.u32 4, %s29
          %s327 = ssub.s32 512, 512
          %328 = vsyncadd %s321, %s327
          %s329 = smul.addr %s28, 4
          %s330 = sadd.s32 %s325, %s329
          %s331 = smul.addr %s330, 128
          %s332 = scalar_lea.hbm %s1, %s331
          %s333 = sshll.u32 %s324, 4
          %s334 = int_to_ptr.vmem [resolvable:$true] %s333
          %339 = dma.hbm_to_vmem [thread:$0]  %s332, 512, %s334, %s321, 128, 128, 8
        $region44: #{tpu_custom_call.1} parent=35 // pred_fallthru
          _
        // Predicated region
        $region45: #{tpu_custom_call.1} parent=35 // pred_check
          %p340 = pneg %p111
        $region46: #{tpu_custom_call.1} parent=35 // pred_check_branch
          %342 = sbr.rel (%p340) target = $region48
        $region47: #{tpu_custom_call.1} parent=35 // pred_region
          %p343 = scmp.lt.s32.totalorder %s28, 1
          %s344 = scalar_select %p343, %s28, 1
          %p345 = scmp.lt.s32.totalorder %s29, 0
          %s346 = scalar_select %p345, %s29, 0
          %s347 = sadd.s32 %s346, %s344
          %s348 = smul.addr %s347, 2
          %s349 = scalar_lea.vmem %s2, %s348
        $region48: #{tpu_custom_call.1} parent=35 // pred_fallthru
          _
      $region36: #{tpu_custom_call.1} parent=5 // pred_fallthru
        _
      %p350 = scmp.le.s32.totalorder 1, %s21
      %p351 = scmp.lt.s32.totalorder %s21, 3
      %p352 = pnand %p350, %p351
      %p353 = pneg %p352
      // Predicated region
      $region49: #{tpu_custom_call.1} parent=5 // pred_check
        _
      $region50: #{tpu_custom_call.1} parent=5 // pred_check_branch
        %355 = sbr.rel (%p352) target = $region52
      $region51: #{tpu_custom_call.1} parent=5 // pred_region
        %s356 = ssub.s32 %s21, 1
        %s357 = sand.u32 %s76, 1
        %s358 = scalar_lea.sflag [#allocation3], %s357
        %s359 = sand.u32 %s76, 1
        %s360 = smul.addr %s359, 32
        %s361 = scalar_lea.vmem [#allocation2], %s360
        // Predicated region
        $region53: #{tpu_custom_call.1} parent=51 // pred_check
          %p362 = pneg %p89
        $region54: #{tpu_custom_call.1} parent=51 // pred_check_branch
          %364 = sbr.rel (%p362) target = $region56
        $region55: #{tpu_custom_call.1} parent=51 // pred_region
          %365 = dma.done %s358, 512
        $region56: #{tpu_custom_call.1} parent=51 // pred_fallthru
          _
        // Predicated region
        $region57: #{tpu_custom_call.1} parent=51 // pred_check
          %p366 = pneg %p138
        $region58: #{tpu_custom_call.1} parent=51 // pred_check_branch
          %368 = sbr.rel (%p366) target = $region60
        $region59: #{tpu_custom_call.1} parent=51 // pred_region
          %369 = dma.done [#allocation6], 256
        $region60: #{tpu_custom_call.1} parent=51 // pred_fallthru
          _
        // Predicated region
        $region61: #{tpu_custom_call.1} parent=51 // pred_check
          %p370 = pneg %p201
        $region62: #{tpu_custom_call.1} parent=51 // pred_check_branch
          %372 = sbr.rel (%p370) target = $region64
        $region63: #{tpu_custom_call.1} parent=51 // pred_region
          %373 = dma.done [#allocation6], 512
        $region64: #{tpu_custom_call.1} parent=51 // pred_fallthru
          _
        %s374 = smul.u32 4, %s31
        %p375 = scmp.lt.s32.totalorder %s30, 1
        %s376 = scalar_select %p375, %s30, 1
        %p377 = scmp.lt.s32.totalorder %s374, 3
        %s378 = scalar_select %p377, %s374, 3
        %s379 = smul.addr %s376, 4
        %s380 = sadd.s32 %s378, %s379
        %s381 = smul.addr %s380, 8
        %s382 = scalar_lea.vmem %s0, %s381
        %p383 = pneg %p61
        %p384 = pneg %p58
        %s385 = sand.u32 %s76, 1
        %s386 = scalar_lea.sflag [#allocation3], %s385
        %s387 = sand.u32 %s76, 1
        %s388 = smul.addr %s387, 32
        %s389 = scalar_lea.vmem [#allocation2], %s388
        %p390 = pneg %p89
        %p391 = pneg %p86
        %p392 = scmp.lt.s32.totalorder %s30, 1
        %s393 = scalar_select %p392, %s30, 1
        %p394 = scmp.lt.s32.totalorder %s31, 0
        %s395 = scalar_select %p394, %s31, 0
        %s396 = sadd.s32 %s395, %s393
        %s397 = smul.addr %s396, 2
        %s398 = scalar_lea.vmem %s2, %s397
        %p399 = pneg %p117
        %p400 = pneg %p114
        %p401 = pneg %p138
        %p402 = pneg %p135
        %p403 = pneg %p159
        %p404 = pneg %p156
        %p405 = pneg %p180
        %p406 = pneg %p177
        %p407 = pneg %p201
        %p408 = pneg %p198
        %p409 = pneg %p222
        %p410 = pneg %p219
        %p411 = pneg %p250
        %p412 = pneg %p247
        %s413 = sand.u32 %s237, 1
        %s414 = scalar_lea.sflag [#allocation4], %s413
        %s415 = sand.u32 %s237, 1
        %s416 = smul.addr %s415, 32
        %s417 = scalar_lea.vmem [#allocation8], %s416
        %s418 = smul.u32 4, %s31
        %p419 = scmp.lt.s32.totalorder %s30, 1
        %s420 = scalar_select %p419, %s30, 1
        %p421 = scmp.lt.s32.totalorder %s418, 3
        %s422 = scalar_select %p421, %s418, 3
        %s423 = smul.addr %s420, 4
        %s424 = sadd.s32 %s422, %s423
        %s425 = smul.addr %s424, 8
        %s426 = scalar_lea.vmem %s0, %s425
        %s427 = smul.u32 4, %s31
        %s428 = smul.u32 4, %s31
        %p429 = scmp.lt.s32.totalorder %s30, 1
        %s430 = scalar_select %p429, %s30, 1
        %p431 = scmp.lt.s32.totalorder %s31, 0
        %s432 = scalar_select %p431, %s31, 0
        %s433 = sadd.s32 %s432, %s430
        %s434 = smul.addr %s433, 2
        %s435 = scalar_lea.vmem %s2, %s434
        %s436 = smul.u32 4, %s31
        %v437 = vld [vmem:[%s426] sm:$0xff]
        %v438 = vld [vmem:[%s426 + $0x8] sm:$0xff]
        %v439 = vld [vmem:[%s426 + $0x10] sm:$0xff]
        %v440 = vld [vmem:[%s426 + $0x18] sm:$0xff]
        %v441 = vld [vmem:[%s361] sm:$0xff]
        %v442 = vld [vmem:[%s361 + $0x8] sm:$0xff]
        %v443 = vld [vmem:[%s361 + $0x10] sm:$0xff]
        %v444 = vld [vmem:[%s361 + $0x18] sm:$0xff]
        %v445 = vld [vmem:[%s435] sm:$0x3]
        %v446 = vlaneseq
        %v447 = vshrl.u32 %v446, 7
        %v448 = vadd.s32 %v447, 8
        %v449 = vadd.s32 %v447, 16
        %v450 = vadd.s32 %v447, 24
        %vm451 = vcmp.eq.s32.totalorder %v447, 0
        %vm452 = vcmp.eq.s32.totalorder %v448, 0
        %vm453 = vcmp.eq.s32.totalorder %v449, 0
        %vm454 = vcmp.eq.s32.totalorder %v450, 0
        %v455 = vrot.slane %v441, 7
        %v456 = vrot.slane %v442, 7
        %v457 = vrot.slane %v443, 7
        %v458 = vrot.slane %v444, 7
        %vm459 = vcmp.lt.s32.totalorder %v447, 1
        %v460 = vsel %vm459, %v457, %v458
        %v461 = vsel %vm459, %v456, %v457
        %v462 = vsel %vm459, %v455, %v456
        %v463 = vsel %vm459, %v458, %v455
        %v464 = vsel %vm451, 1, 0
        %v465 = vsel %vm452, 1, 0
        %v466 = vsel %vm453, 1, 0
        %v467 = vsel %vm454, 1, 0
        %vm468 = vcmp.eq.s32.totalorder %v464, 1
        %vm469 = vcmp.eq.s32.totalorder %v465, 1
        %vm470 = vcmp.eq.s32.totalorder %v466, 1
        %vm471 = vcmp.eq.s32.totalorder %v467, 1
        %v472 = vlaneseq
        %v473 = vshrl.u32 %v472, 7
        %v474 = vsub.s32 0, %v473
        %v475 = vrot.slane %v445, %v474
        %v476 = vsel %vm468, %v475, %v463
        %v477 = vsel %vm469, %v475, %v462
        %v478 = vsel %vm470, %v475, %v461
        %v479 = vsel %vm471, %v475, %v460
        %vm480 = vcmp.eq.s32.totalorder %v447, 31
        %vm481 = vcmp.eq.s32.totalorder %v448, 31
        %vm482 = vcmp.eq.s32.totalorder %v449, 31
        %vm483 = vcmp.eq.s32.totalorder %v450, 31
        %v484 = vrot.slane %v441, 1
        %v485 = vrot.slane %v442, 1
        %v486 = vrot.slane %v443, 1
        %v487 = vrot.slane %v444, 1
        %vm488 = vcmp.lt.s32.totalorder %v447, 7
        %v489 = vsel %vm488, %v486, %v487
        %v490 = vsel %vm488, %v485, %v486
        %v491 = vsel %vm488, %v484, %v485
        %v492 = vsel %vm488, %v487, %v484
        %v493 = vsel %vm480, 1, 0
        %v494 = vsel %vm481, 1, 0
        %v495 = vsel %vm482, 1, 0
        %v496 = vsel %vm483, 1, 0
        %vm497 = vcmp.eq.s32.totalorder %v493, 1
        %vm498 = vcmp.eq.s32.totalorder %v494, 1
        %vm499 = vcmp.eq.s32.totalorder %v495, 1
        %vm500 = vcmp.eq.s32.totalorder %v496, 1
        %v501 = vlaneseq
        %v502 = vshrl.u32 %v501, 7
        %v503 = vsub.s32 1, %v502
        %v504 = vrot.slane %v445, %v503
        %v505 = vsel %vm497, %v504, %v491
        %v506 = vsel %vm498, %v504, %v490
        %v507 = vsel %vm499, %v504, %v489
        %v508 = vsel %vm500, %v504, %v492
        %v509 = vld [vmem:[#allocation5] sm:$0xff]
        %v510 = vld [vmem:[#allocation5 + $0x8] sm:$0xff]
        %v511 = vld [vmem:[%s4] sm:$0xff]
        %v512 = vld [vmem:[%s4 + $0x8] sm:$0xff]
        %v513 = vld [vmem:[%s4 + $0x10] sm:$0xff]
        %v514 = vld [vmem:[%s4 + $0x18] sm:$0xff]
        %vm515 = vcmask 261120
        %v517 = vsel %vm515, %v441, 0
        %v520 = vsel %vm515, %v442, 0
        %v523 = vsel %vm515, %v443, 0
        %v526 = vsel %vm515, %v444, 0
        %528 = vmatprep.subr.mxu0 0.0
        %529 = vmatpush1.msra.mxu0 0.0
        %530 = vmatprep.subr.mxu0 0.0
        %531 = vmatpush1.msra.mxu0 0.0
        %532 = vmatprep.subr.mxu0 0.0
        %533 = vmatpush1.msra.mxu0 0.0
        %534 = vmatprep.subr.mxu0 0.0
        %535 = vmatpush1.msra.mxu0 0.0
        %536 = vmatprep.subr.mxu0 0.0
        %537 = vmatpush1.msra.mxu0 0.0
        %538 = vmatprep.subr.mxu0 0.0
        %539 = vmatpush1.msra.mxu0 0.0
        %540 = vmatprep.subr.mxu0 0.0
        %541 = vmatpush1.msra.mxu0 0.0
        %542 = vmatprep.subr.mxu0 0.0
        %543 = vmatpush1.msra.mxu0 0.0
        %544 = vmatprep.subr.mxu0 0.0
        %545 = vmatpush1.msra.mxu0 0.0
        %546 = vmatprep.subr.mxu0 0.0
        %547 = vmatpush1.msra.mxu0 0.0
        %548 = vmatprep.subr.mxu0 0.0
        %549 = vmatpush1.msra.mxu0 0.0
        %550 = vmatprep.subr.mxu0 0.0
        %551 = vmatpush1.msra.mxu0 0.0
        %552 = vmatprep.subr.mxu0 0.0
        %553 = vmatpush1.msra.mxu0 %v514
        %554 = vmatprep.subr.mxu0 0.0
        %555 = vmatpush1.msra.mxu0 %v513
        %556 = vmatprep.subr.mxu0 0.0
        %557 = vmatpush1.msra.mxu0 %v512
        %558 = vmatprep.subr.mxu0 0.0
        %559 = vmatpush1.msra.mxu0 %v511
        %560 = vmatprep.subr.mxu0 0.0
        %561 = vmatpush2.msra.mxu0 0.0
        %562 = vmatprep.subr.mxu0 0.0
        %563 = vmatpush2.msra.mxu0 0.0
        %564 = vmatprep.subr.mxu0 0.0
        %565 = vmatpush2.msra.mxu0 0.0
        %566 = vmatprep.subr.mxu0 0.0
        %567 = vmatpush2.msra.mxu0 0.0
        %568 = vmatprep.subr.mxu0 0.0
        %569 = vmatpush2.msra.mxu0 0.0
        %570 = vmatprep.subr.mxu0 0.0
        %571 = vmatpush2.msra.mxu0 0.0
        %572 = vmatprep.subr.mxu0 0.0
        %573 = vmatpush2.msra.mxu0 0.0
        %574 = vmatprep.subr.mxu0 0.0
        %575 = vmatpush2.msra.mxu0 0.0
        %576 = vmatprep.subr.mxu0 0.0
        %577 = vmatpush2.msra.mxu0 0.0
        %578 = vmatprep.subr.mxu0 0.0
        %579 = vmatpush2.msra.mxu0 0.0
        %580 = vmatprep.subr.mxu0 0.0
        %581 = vmatpush2.msra.mxu0 0.0
        %582 = vmatprep.subr.mxu0 0.0
        %583 = vmatpush2.msra.mxu0 0.0
        %584 = vmatprep.subr.mxu0 0.0
        %585 = vmatpush2.msra.mxu0 0.0
        %586 = vmatprep.subr.mxu0 0.0
        %587 = vmatpush2.msra.mxu0 0.0
        %588 = vmatprep.subr.mxu0 0.0
        %589 = vmatpush2.msra.mxu0 0.0
        %590 = vmatprep.subr.mxu0 0.0
        %591 = vmatpush2.msra.mxu0 0.0
        %592 = vmatprep.mubr.f32.mxu0 0.0
        %593 = vmatmul.mubr.f32.gmra.mxu0 %v517
        %v594 = vpop.f32.mrf.mxu0
        %v595 = vadd.f32 0.0, %v594
        %v596 = vpop.f32.mrf.mxu0
        %597 = vmatprep.mubr.f32.mxu0 0.0
        %598 = vmatmul.mubr.f32.gmra.mxu0 %v520
        %v599 = vpop.f32.mrf.mxu0
        %v600 = vadd.f32 0.0, %v599
        %v601 = vpop.f32.mrf.mxu0
        %602 = vmatprep.mubr.f32.mxu0 0.0
        %603 = vmatmul.mubr.f32.gmra.mxu0 %v523
        %v604 = vpop.f32.mrf.mxu0
        %v605 = vadd.f32 0.0, %v604
        %v606 = vpop.f32.mrf.mxu0
        %607 = vmatprep.mubr.f32.mxu0 0.0
        %608 = vmatmul.mubr.f32.gmra.mxu0 %v526
        %v609 = vpop.f32.mrf.mxu0
        %v610 = vadd.f32 0.0, %v609
        %v611 = vpop.f32.mrf.mxu0
        %612 = vdwg.mxu0
        %vm613 = vcmask 130048
        %v615 = vsel %vm613, %v437, 0
        %v618 = vsel %vm613, %v438, 0
        %v621 = vsel %vm613, %v439, 0
        %v624 = vsel %vm613, %v440, 0
        %626 = vmatprep.subr.mxu0 0.0
        %627 = vmatpush1.msra.mxu0 0.0
        %628 = vmatprep.subr.mxu0 0.0
        %629 = vmatpush1.msra.mxu0 0.0
        %630 = vmatprep.subr.mxu0 0.0
        %631 = vmatpush1.msra.mxu0 0.0
        %632 = vmatprep.subr.mxu0 0.0
        %633 = vmatpush1.msra.mxu0 0.0
        %634 = vmatprep.subr.mxu0 0.0
        %635 = vmatpush1.msra.mxu0 0.0
        %636 = vmatprep.subr.mxu0 0.0
        %637 = vmatpush1.msra.mxu0 0.0
        %638 = vmatprep.subr.mxu0 0.0
        %639 = vmatpush1.msra.mxu0 0.0
        %640 = vmatprep.subr.mxu0 0.0
        %641 = vmatpush1.msra.mxu0 0.0
        %642 = vmatprep.subr.mxu0 0.0
        %643 = vmatpush1.msra.mxu0 0.0
        %644 = vmatprep.subr.mxu0 0.0
        %645 = vmatpush1.msra.mxu0 0.0
        %646 = vmatprep.subr.mxu0 0.0
        %647 = vmatpush1.msra.mxu0 0.0
        %648 = vmatprep.subr.mxu0 0.0
        %649 = vmatpush1.msra.mxu0 0.0
        %650 = vmatprep.subr.mxu0 0.0
        %651 = vmatpush1.msra.mxu0 0.0
        %652 = vmatprep.subr.mxu0 0.0
        %653 = vmatpush1.msra.mxu0 0.0
        %654 = vmatprep.subr.mxu0 0.0
        %655 = vmatpush1.msra.mxu0 %v510
        %656 = vmatprep.subr.mxu0 0.0
        %657 = vmatpush1.msra.mxu0 %v509
        %658 = vmatprep.subr.mxu0 0.0
        %659 = vmatpush2.msra.mxu0 0.0
        %660 = vmatprep.subr.mxu0 0.0
        %661 = vmatpush2.msra.mxu0 0.0
        %662 = vmatprep.subr.mxu0 0.0
        %663 = vmatpush2.msra.mxu0 0.0
        %664 = vmatprep.subr.mxu0 0.0
        %665 = vmatpush2.msra.mxu0 0.0
        %666 = vmatprep.subr.mxu0 0.0
        %667 = vmatpush2.msra.mxu0 0.0
        %668 = vmatprep.subr.mxu0 0.0
        %669 = vmatpush2.msra.mxu0 0.0
        %670 = vmatprep.subr.mxu0 0.0
        %671 = vmatpush2.msra.mxu0 0.0
        %672 = vmatprep.subr.mxu0 0.0
        %673 = vmatpush2.msra.mxu0 0.0
        %674 = vmatprep.subr.mxu0 0.0
        %675 = vmatpush2.msra.mxu0 0.0
        %676 = vmatprep.subr.mxu0 0.0
        %677 = vmatpush2.msra.mxu0 0.0
        %678 = vmatprep.subr.mxu0 0.0
        %679 = vmatpush2.msra.mxu0 0.0
        %680 = vmatprep.subr.mxu0 0.0
        %681 = vmatpush2.msra.mxu0 0.0
        %682 = vmatprep.subr.mxu0 0.0
        %683 = vmatpush2.msra.mxu0 0.0
        %684 = vmatprep.subr.mxu0 0.0
        %685 = vmatpush2.msra.mxu0 0.0
        %686 = vmatprep.subr.mxu0 0.0
        %687 = vmatpush2.msra.mxu0 0.0
        %688 = vmatprep.subr.mxu0 0.0
        %689 = vmatpush2.msra.mxu0 0.0
        %690 = vmatprep.mubr.f32.mxu0 0.0
        %691 = vmatmul.mubr.f32.gmra.mxu0 %v615
        %v692 = vpop.f32.mrf.mxu0
        %v693 = vadd.f32 %v595, %v692
        %v694 = vpop.f32.mrf.mxu0
        %695 = vmatprep.mubr.f32.mxu0 0.0
        %696 = vmatmul.mubr.f32.gmra.mxu0 %v618
        %v697 = vpop.f32.mrf.mxu0
        %v698 = vadd.f32 %v600, %v697
        %v699 = vpop.f32.mrf.mxu0
        %700 = vmatprep.mubr.f32.mxu0 0.0
        %701 = vmatmul.mubr.f32.gmra.mxu0 %v621
        %v702 = vpop.f32.mrf.mxu0
        %v703 = vadd.f32 %v605, %v702
        %v704 = vpop.f32.mrf.mxu0
        %705 = vmatprep.mubr.f32.mxu0 0.0
        %706 = vmatmul.mubr.f32.gmra.mxu0 %v624
        %v707 = vpop.f32.mrf.mxu0
        %v708 = vadd.f32 %v610, %v707
        %v709 = vpop.f32.mrf.mxu0
        %710 = vdwg.mxu0
        %s711 = scalar_lea.vmem %s4, 32
        %v712 = vld [vmem:[%s711] sm:$0xff]
        %v713 = vld [vmem:[%s711 + $0x8] sm:$0xff]
        %v714 = vld [vmem:[%s711 + $0x10] sm:$0xff]
        %v715 = vld [vmem:[%s711 + $0x18] sm:$0xff]
        %v717 = vsel %vm515, %v476, 0
        %v720 = vsel %vm515, %v477, 0
        %v723 = vsel %vm515, %v478, 0
        %v726 = vsel %vm515, %v479, 0
        %728 = vmatprep.subr.mxu0 0.0
        %729 = vmatpush1.msra.mxu0 0.0
        %730 = vmatprep.subr.mxu0 0.0
        %731 = vmatpush1.msra.mxu0 0.0
        %732 = vmatprep.subr.mxu0 0.0
        %733 = vmatpush1.msra.mxu0 0.0
        %734 = vmatprep.subr.mxu0 0.0
        %735 = vmatpush1.msra.mxu0 0.0
        %736 = vmatprep.subr.mxu0 0.0
        %737 = vmatpush1.msra.mxu0 0.0
        %738 = vmatprep.subr.mxu0 0.0
        %739 = vmatpush1.msra.mxu0 0.0
        %740 = vmatprep.subr.mxu0 0.0
        %741 = vmatpush1.msra.mxu0 0.0
        %742 = vmatprep.subr.mxu0 0.0
        %743 = vmatpush1.msra.mxu0 0.0
        %744 = vmatprep.subr.mxu0 0.0
        %745 = vmatpush1.msra.mxu0 0.0
        %746 = vmatprep.subr.mxu0 0.0
        %747 = vmatpush1.msra.mxu0 0.0
        %748 = vmatprep.subr.mxu0 0.0
        %749 = vmatpush1.msra.mxu0 0.0
        %750 = vmatprep.subr.mxu0 0.0
        %751 = vmatpush1.msra.mxu0 0.0
        %752 = vmatprep.subr.mxu0 0.0
        %753 = vmatpush1.msra.mxu0 %v715
        %754 = vmatprep.subr.mxu0 0.0
        %755 = vmatpush1.msra.mxu0 %v714
        %756 = vmatprep.subr.mxu0 0.0
        %757 = vmatpush1.msra.mxu0 %v713
        %758 = vmatprep.subr.mxu0 0.0
        %759 = vmatpush1.msra.mxu0 %v712
        %760 = vmatprep.subr.mxu0 0.0
        %761 = vmatpush2.msra.mxu0 0.0
        %762 = vmatprep.subr.mxu0 0.0
        %763 = vmatpush2.msra.mxu0 0.0
        %764 = vmatprep.subr.mxu0 0.0
        %765 = vmatpush2.msra.mxu0 0.0
        %766 = vmatprep.subr.mxu0 0.0
        %767 = vmatpush2.msra.mxu0 0.0
        %768 = vmatprep.subr.mxu0 0.0
        %769 = vmatpush2.msra.mxu0 0.0
        %770 = vmatprep.subr.mxu0 0.0
        %771 = vmatpush2.msra.mxu0 0.0
        %772 = vmatprep.subr.mxu0 0.0
        %773 = vmatpush2.msra.mxu0 0.0
        %774 = vmatprep.subr.mxu0 0.0
        %775 = vmatpush2.msra.mxu0 0.0
        %776 = vmatprep.subr.mxu0 0.0
        %777 = vmatpush2.msra.mxu0 0.0
        %778 = vmatprep.subr.mxu0 0.0
        %779 = vmatpush2.msra.mxu0 0.0
        %780 = vmatprep.subr.mxu0 0.0
        %781 = vmatpush2.msra.mxu0 0.0
        %782 = vmatprep.subr.mxu0 0.0
        %783 = vmatpush2.msra.mxu0 0.0
        %784 = vmatprep.subr.mxu0 0.0
        %785 = vmatpush2.msra.mxu0 0.0
        %786 = vmatprep.subr.mxu0 0.0
        %787 = vmatpush2.msra.mxu0 0.0
        %788 = vmatprep.subr.mxu0 0.0
        %789 = vmatpush2.msra.mxu0 0.0
        %790 = vmatprep.subr.mxu0 0.0
        %791 = vmatpush2.msra.mxu0 0.0
        %792 = vmatprep.mubr.f32.mxu0 0.0
        %793 = vmatmul.mubr.f32.gmra.mxu0 %v717
        %v794 = vpop.f32.mrf.mxu0
        %v795 = vadd.f32 0.0, %v794
        %v796 = vpop.f32.mrf.mxu0
        %797 = vmatprep.mubr.f32.mxu0 0.0
        %798 = vmatmul.mubr.f32.gmra.mxu0 %v720
        %v799 = vpop.f32.mrf.mxu0
        %v800 = vadd.f32 0.0, %v799
        %v801 = vpop.f32.mrf.mxu0
        %802 = vmatprep.mubr.f32.mxu0 0.0
        %803 = vmatmul.mubr.f32.gmra.mxu0 %v723
        %v804 = vpop.f32.mrf.mxu0
        %v805 = vadd.f32 0.0, %v804
        %v806 = vpop.f32.mrf.mxu0
        %807 = vmatprep.mubr.f32.mxu0 0.0
        %808 = vmatmul.mubr.f32.gmra.mxu0 %v726
        %v809 = vpop.f32.mrf.mxu0
        %v810 = vadd.f32 0.0, %v809
        %v811 = vpop.f32.mrf.mxu0
        %812 = vdwg.mxu0
        %v813 = vadd.f32 %v693, %v795
        %v814 = vadd.f32 %v698, %v800
        %v815 = vadd.f32 %v703, %v805
        %v816 = vadd.f32 %v708, %v810
        %s817 = scalar_lea.vmem %s4, 64
        %v818 = vld [vmem:[%s817] sm:$0xff]
        %v819 = vld [vmem:[%s817 + $0x8] sm:$0xff]
        %v820 = vld [vmem:[%s817 + $0x10] sm:$0xff]
        %v821 = vld [vmem:[%s817 + $0x18] sm:$0xff]
        %v823 = vsel %vm515, %v505, 0
        %v826 = vsel %vm515, %v506, 0
        %v829 = vsel %vm515, %v507, 0
        %v832 = vsel %vm515, %v508, 0
        %834 = vmatprep.subr.mxu0 0.0
        %835 = vmatpush1.msra.mxu0 0.0
        %836 = vmatprep.subr.mxu0 0.0
        %837 = vmatpush1.msra.mxu0 0.0
        %838 = vmatprep.subr.mxu0 0.0
        %839 = vmatpush1.msra.mxu0 0.0
        %840 = vmatprep.subr.mxu0 0.0
        %841 = vmatpush1.msra.mxu0 0.0
        %842 = vmatprep.subr.mxu0 0.0
        %843 = vmatpush1.msra.mxu0 0.0
        %844 = vmatprep.subr.mxu0 0.0
        %845 = vmatpush1.msra.mxu0 0.0
        %846 = vmatprep.subr.mxu0 0.0
        %847 = vmatpush1.msra.mxu0 0.0
        %848 = vmatprep.subr.mxu0 0.0
        %849 = vmatpush1.msra.mxu0 0.0
        %850 = vmatprep.subr.mxu0 0.0
        %851 = vmatpush1.msra.mxu0 0.0
        %852 = vmatprep.subr.mxu0 0.0
        %853 = vmatpush1.msra.mxu0 0.0
        %854 = vmatprep.subr.mxu0 0.0
        %855 = vmatpush1.msra.mxu0 0.0
        %856 = vmatprep.subr.mxu0 0.0
        %857 = vmatpush1.msra.mxu0 0.0
        %858 = vmatprep.subr.mxu0 0.0
        %859 = vmatpush1.msra.mxu0 %v821
        %860 = vmatprep.subr.mxu0 0.0
        %861 = vmatpush1.msra.mxu0 %v820
        %862 = vmatprep.subr.mxu0 0.0
        %863 = vmatpush1.msra.mxu0 %v819
        %864 = vmatprep.subr.mxu0 0.0
        %865 = vmatpush1.msra.mxu0 %v818
        %866 = vmatprep.subr.mxu0 0.0
        %867 = vmatpush2.msra.mxu0 0.0
        %868 = vmatprep.subr.mxu0 0.0
        %869 = vmatpush2.msra.mxu0 0.0
        %870 = vmatprep.subr.mxu0 0.0
        %871 = vmatpush2.msra.mxu0 0.0
        %872 = vmatprep.subr.mxu0 0.0
        %873 = vmatpush2.msra.mxu0 0.0
        %874 = vmatprep.subr.mxu0 0.0
        %875 = vmatpush2.msra.mxu0 0.0
        %876 = vmatprep.subr.mxu0 0.0
        %877 = vmatpush2.msra.mxu0 0.0
        %878 = vmatprep.subr.mxu0 0.0
        %879 = vmatpush2.msra.mxu0 0.0
        %880 = vmatprep.subr.mxu0 0.0
        %881 = vmatpush2.msra.mxu0 0.0
        %882 = vmatprep.subr.mxu0 0.0
        %883 = vmatpush2.msra.mxu0 0.0
        %884 = vmatprep.subr.mxu0 0.0
        %885 = vmatpush2.msra.mxu0 0.0
        %886 = vmatprep.subr.mxu0 0.0
        %887 = vmatpush2.msra.mxu0 0.0
        %888 = vmatprep.subr.mxu0 0.0
        %889 = vmatpush2.msra.mxu0 0.0
        %890 = vmatprep.subr.mxu0 0.0
        %891 = vmatpush2.msra.mxu0 0.0
        %892 = vmatprep.subr.mxu0 0.0
        %893 = vmatpush2.msra.mxu0 0.0
        %894 = vmatprep.subr.mxu0 0.0
        %895 = vmatpush2.msra.mxu0 0.0
        %896 = vmatprep.subr.mxu0 0.0
        %897 = vmatpush2.msra.mxu0 0.0
        %898 = vmatprep.mubr.f32.mxu0 0.0
        %899 = vmatmul.mubr.f32.gmra.mxu0 %v823
        %v900 = vpop.f32.mrf.mxu0
        %v901 = vadd.f32 0.0, %v900
        %v902 = vpop.f32.mrf.mxu0
        %903 = vmatprep.mubr.f32.mxu0 0.0
        %904 = vmatmul.mubr.f32.gmra.mxu0 %v826
        %v905 = vpop.f32.mrf.mxu0
        %v906 = vadd.f32 0.0, %v905
        %v907 = vpop.f32.mrf.mxu0
        %908 = vmatprep.mubr.f32.mxu0 0.0
        %909 = vmatmul.mubr.f32.gmra.mxu0 %v829
        %v910 = vpop.f32.mrf.mxu0
        %v911 = vadd.f32 0.0, %v910
        %v912 = vpop.f32.mrf.mxu0
        %913 = vmatprep.mubr.f32.mxu0 0.0
        %914 = vmatmul.mubr.f32.gmra.mxu0 %v832
        %v915 = vpop.f32.mrf.mxu0
        %v916 = vadd.f32 0.0, %v915
        %v917 = vpop.f32.mrf.mxu0
        %918 = vdwg.mxu0
        %v919 = vadd.f32 %v813, %v901
        %v920 = vadd.f32 %v814, %v906
        %v921 = vadd.f32 %v815, %v911
        %v922 = vadd.f32 %v816, %v916
        %v923 = vld [vmem:[%s5] sm:$0x1]
        %v925 = vlaneseq
        %v926 = vshrl.u32 %v925, 7
        %v927 = vsub.s32 0, %v926
        %v928 = vrot.slane %v923, %v927
        %v930 = vadd.f32 %v919, %v928
        %v931 = vadd.f32 %v920, %v928
        %v932 = vadd.f32 %v921, %v928
        %v933 = vadd.f32 %v922, %v928
        %v934 = vmax.f32 %v930, 0.0
        %v935 = vmax.f32 %v931, 0.0
        %v936 = vmax.f32 %v932, 0.0
        %v937 = vmax.f32 %v933, 0.0
        %v938 = vld [vmem:[#allocation7] sm:$0xff]
        %v939 = vld [vmem:[#allocation7 + $0x8] sm:$0xff]
        %v940 = vld [vmem:[#allocation7 + $0x10] sm:$0xff]
        %v941 = vld [vmem:[#allocation7 + $0x18] sm:$0xff]
        %v942 = vld [vmem:[%s7] sm:$0x1]
        %v944 = vlaneseq
        %v945 = vshrl.u32 %v944, 7
        %v946 = vsub.s32 0, %v945
        %v947 = vrot.slane %v942, %v946
        %v950 = vsel %vm515, %v934, 0
        %v953 = vsel %vm515, %v935, 0
        %v956 = vsel %vm515, %v936, 0
        %v959 = vsel %vm515, %v937, 0
        %961 = vmatprep.subr.mxu0 0.0
        %962 = vmatpush1.msra.mxu0 0.0
        %963 = vmatprep.subr.mxu0 0.0
        %964 = vmatpush1.msra.mxu0 0.0
        %965 = vmatprep.subr.mxu0 0.0
        %966 = vmatpush1.msra.mxu0 0.0
        %967 = vmatprep.subr.mxu0 0.0
        %968 = vmatpush1.msra.mxu0 0.0
        %969 = vmatprep.subr.mxu0 0.0
        %970 = vmatpush1.msra.mxu0 0.0
        %971 = vmatprep.subr.mxu0 0.0
        %972 = vmatpush1.msra.mxu0 0.0
        %973 = vmatprep.subr.mxu0 0.0
        %974 = vmatpush1.msra.mxu0 0.0
        %975 = vmatprep.subr.mxu0 0.0
        %976 = vmatpush1.msra.mxu0 0.0
        %977 = vmatprep.subr.mxu0 0.0
        %978 = vmatpush1.msra.mxu0 0.0
        %979 = vmatprep.subr.mxu0 0.0
        %980 = vmatpush1.msra.mxu0 0.0
        %981 = vmatprep.subr.mxu0 0.0
        %982 = vmatpush1.msra.mxu0 0.0
        %983 = vmatprep.subr.mxu0 0.0
        %984 = vmatpush1.msra.mxu0 0.0
        %985 = vmatprep.subr.mxu0 0.0
        %986 = vmatpush1.msra.mxu0 %v941
        %987 = vmatprep.subr.mxu0 0.0
        %988 = vmatpush1.msra.mxu0 %v940
        %989 = vmatprep.subr.mxu0 0.0
        %990 = vmatpush1.msra.mxu0 %v939
        %991 = vmatprep.subr.mxu0 0.0
        %992 = vmatpush1.msra.mxu0 %v938
        %993 = vmatprep.subr.mxu0 0.0
        %994 = vmatpush2.msra.mxu0 0.0
        %995 = vmatprep.subr.mxu0 0.0
        %996 = vmatpush2.msra.mxu0 0.0
        %997 = vmatprep.subr.mxu0 0.0
        %998 = vmatpush2.msra.mxu0 0.0
        %999 = vmatprep.subr.mxu0 0.0
        %1000 = vmatpush2.msra.mxu0 0.0
        %1001 = vmatprep.subr.mxu0 0.0
        %1002 = vmatpush2.msra.mxu0 0.0
        %1003 = vmatprep.subr.mxu0 0.0
        %1004 = vmatpush2.msra.mxu0 0.0
        %1005 = vmatprep.subr.mxu0 0.0
        %1006 = vmatpush2.msra.mxu0 0.0
        %1007 = vmatprep.subr.mxu0 0.0
        %1008 = vmatpush2.msra.mxu0 0.0
        %1009 = vmatprep.subr.mxu0 0.0
        %1010 = vmatpush2.msra.mxu0 0.0
        %1011 = vmatprep.subr.mxu0 0.0
        %1012 = vmatpush2.msra.mxu0 0.0
        %1013 = vmatprep.subr.mxu0 0.0
        %1014 = vmatpush2.msra.mxu0 0.0
        %1015 = vmatprep.subr.mxu0 0.0
        %1016 = vmatpush2.msra.mxu0 0.0
        %1017 = vmatprep.subr.mxu0 0.0
        %1018 = vmatpush2.msra.mxu0 0.0
        %1019 = vmatprep.subr.mxu0 0.0
        %1020 = vmatpush2.msra.mxu0 0.0
        %1021 = vmatprep.subr.mxu0 0.0
        %1022 = vmatpush2.msra.mxu0 0.0
        %1023 = vmatprep.subr.mxu0 0.0
        %1024 = vmatpush2.msra.mxu0 0.0
        %1025 = vmatprep.mubr.f32.mxu0 0.0
        %1026 = vmatmul.mubr.f32.gmra.mxu0 %v950
        %v1027 = vpop.f32.mrf.mxu0
        %v1028 = vadd.f32 %v947, %v1027
        %v1029 = vpop.f32.mrf.mxu0
        %1030 = vmatprep.mubr.f32.mxu0 0.0
        %1031 = vmatmul.mubr.f32.gmra.mxu0 %v953
        %v1032 = vpop.f32.mrf.mxu0
        %v1033 = vadd.f32 %v947, %v1032
        %v1034 = vpop.f32.mrf.mxu0
        %1035 = vmatprep.mubr.f32.mxu0 0.0
        %1036 = vmatmul.mubr.f32.gmra.mxu0 %v956
        %v1037 = vpop.f32.mrf.mxu0
        %v1038 = vadd.f32 %v947, %v1037
        %v1039 = vpop.f32.mrf.mxu0
        %1040 = vmatprep.mubr.f32.mxu0 0.0
        %1041 = vmatmul.mubr.f32.gmra.mxu0 %v959
        %v1042 = vpop.f32.mrf.mxu0
        %v1043 = vadd.f32 %v947, %v1042
        %v1044 = vpop.f32.mrf.mxu0
        %1045 = vdwg.mxu0
        %v1046 = vxor.u32 %v1028, 2147483648
        %v1047 = vxor.u32 %v1033, 2147483648
        %v1048 = vxor.u32 %v1038, 2147483648
        %v1049 = vxor.u32 %v1043, 2147483648
        %v1050 = vmul.f32 %v1046, 1.442695
        %v1051 = vpow.pop %v1050
        %v1052 = vmul.f32 %v1047, 1.442695
        %v1053 = vpow.pop %v1052
        %v1054 = vmul.f32 %v1048, 1.442695
        %v1055 = vpow.pop %v1054
        %v1056 = vmul.f32 %v1049, 1.442695
        %v1057 = vpow.pop %v1056
        %v1058 = vadd.f32 %v1051, 1.0
        %v1059 = vadd.f32 %v1053, 1.0
        %v1060 = vadd.f32 %v1055, 1.0
        %v1061 = vadd.f32 %v1057, 1.0
        %v1062 = vrcp.pop %v1058
        %v1063 = vmul.f32 1.0, %v1062
        %v1064 = vrcp.pop %v1059
        %v1065 = vmul.f32 1.0, %v1064
        %v1066 = vrcp.pop %v1060
        %v1067 = vmul.f32 1.0, %v1066
        %v1068 = vrcp.pop %v1061
        %v1069 = vmul.f32 1.0, %v1068
        %v1070 = vmul.f32 %v1063, %v441
        %v1071 = vmul.f32 %v1065, %v442
        %v1072 = vmul.f32 %v1067, %v443
        %v1073 = vmul.f32 %v1069, %v444
        %1074 = vst.msk [vmem:[%s417] sm:$0xff] %vm515, %v1070
        %1075 = vst.msk [vmem:[%s417 + $0x8] sm:$0xff] %vm515, %v1071
        %1076 = vst.msk [vmem:[%s417 + $0x10] sm:$0xff] %vm515, %v1072
        %1077 = vst.msk [vmem:[%s417 + $0x18] sm:$0xff] %vm515, %v1073
        %s1078 = sand.u32 %s237, 1
        %s1079 = scalar_lea.sflag [#allocation4], %s1078
        %s1080 = sand.u32 %s237, 1
        %s1081 = smul.addr %s1080, 32
        %s1082 = scalar_lea.vmem [#allocation8], %s1081
        // Predicated region
        $region65: #{tpu_custom_call.1} parent=51 // pred_check
          %p1083 = pneg %p247
        $region66: #{tpu_custom_call.1} parent=51 // pred_check_branch
          %1085 = sbr.rel (%p1083) target = $region68
        $region67: #{tpu_custom_call.1} parent=51 // pred_region
          %s1086 = smul.u32 4, %s31
          %s1088 = ssub.s32 512, 512
          %1089 = vsyncadd %s1079, %s1088
          %s1090 = smul.addr %s30, 4
          %s1091 = sadd.s32 %s1086, %s1090
          %s1092 = smul.addr %s1091, 128
          %s1093 = scalar_lea.hbm %s8, %s1092
          %s1094 = sshll.u32 %s1082, 4
          %s1095 = int_to_ptr.vmem [resolvable:$true] %s1094
          %1100 = dma.vmem_to_hbm [thread:$0]  %s1095, 512, %s1093, %s1079, 128, 128, 8
        $region68: #{tpu_custom_call.1} parent=51 // pred_fallthru
          _
      $region52: #{tpu_custom_call.1} parent=5 // pred_fallthru
        _
      %p1101 = scmp.le.s32.totalorder 2, %s21
      // Predicated region
      $region69: #{tpu_custom_call.1} parent=5 // pred_check
        %p1102 = pneg %p1101
      $region70: #{tpu_custom_call.1} parent=5 // pred_check_branch
        %1104 = sbr.rel (%p1102) target = $region72
      $region71: #{tpu_custom_call.1} parent=5 // pred_region
        %s1105 = ssub.s32 %s21, 2
        // Predicated region
        $region73: #{tpu_custom_call.1} parent=71 // pred_check
          %p1106 = pneg %p253
        $region74: #{tpu_custom_call.1} parent=71 // pred_check_branch
          %1108 = sbr.rel (%p1106) target = $region76
        $region75: #{tpu_custom_call.1} parent=71 // pred_region
          %s1109 = sand.u32 %s238, 1
          %s1110 = scalar_lea.sflag [#allocation4], %s1109
          %s1111 = sand.u32 %s238, 1
          %s1112 = smul.addr %s1111, 32
          %s1113 = scalar_lea.vmem [#allocation8], %s1112
          %1114 = dma.done %s1110, 512
        $region76: #{tpu_custom_call.1} parent=71 // pred_fallthru
          _
      $region72: #{tpu_custom_call.1} parent=5 // pred_fallthru
        _
    $region6: #{tpu_custom_call.1} parent=1 // loop_footer
      %s25 = sadd.s32 1, %s21
    $region7: #{tpu_custom_call.1} parent=1 // loop_footer_branch
      %20 = sbr.rel target = $region3
    $region8: #{tpu_custom_call.1} parent=1 // loop_exit
      _
    %1115 = vsyncpa [#allocation3], 1
    %s1116 = scalar_lea.sflag [#allocation3], 1
    %1117 = vsyncpa %s1116, 1
    %1118 = vsyncpa [#allocation6], 1
    %1119 = vsyncpa [#allocation4], 1
    %s1120 = scalar_lea.sflag [#allocation4], 1
    %1121 = vsyncpa %s1120, 1

</llo_original>
